<compile_context>
chip_gen: v5e
topology: v5e:2x2
jax: 0.10.0
libtpu: 0.0.40
codegen_flags: <defaults>
</compile_context>

<pallas_src>
import functools
import math

import jax
import jax.numpy as jnp
from jax import lax
from jax.experimental import pallas as pl
from jax.experimental.pallas import tpu as pltpu

LN_EPS = 1e-5  # PyTorch nn.LayerNorm default


# ---------------------------------------------------------------------------
# VMEM / tiling helpers
# ---------------------------------------------------------------------------
def _round_up(x, m):
    return (x + m - 1) // m * m


def _vmem_limit_bytes():
    """Physical VMEM per TensorCore: v5e/v6e = 128 MiB, v7x = 64 MiB.
    Raise the scoped limit well above the 16/32 MiB defaults but stay safe."""
    try:
        kind = jax.devices()[0].device_kind.lower()
    except Exception:
        kind = ""
    if "v7" in kind:
        return 56 * 1024 * 1024
    return 100 * 1024 * 1024


_VMEM_LIMIT = _vmem_limit_bytes()
# Working-set budget for one grid step (headroom left for compiler temps).
_TILE_BUDGET = int(_VMEM_LIMIT * 0.6)

_cparams = functools.partial(pltpu.CompilerParams, vmem_limit_bytes=_VMEM_LIMIT)


def _axis_tile(n):
    """Tile for a contraction / output-column axis: 512/256/128 when they
    divide evenly, else the full axis (a full-extent block dim is always legal)."""
    for t in (512, 256, 128):
        if n > t and n % t == 0:
            return t
    return n


def _row_tile(n_rows, per_row_bytes, fixed_bytes, budget=_TILE_BUDGET):
    """Largest multiple-of-8 row tile whose (double-buffered) working set fits
    the VMEM budget.  Keeps >=2 grid steps when possible so v7x's two
    TensorCores both stream (dimension_semantics='parallel')."""
    avail = max(budget - fixed_bytes, 8 * per_row_bytes)
    tm = (avail // max(per_row_bytes, 1)) // 8 * 8
    tm = int(max(8, min(tm, 2048)))
    r8 = _round_up(n_rows, 8)
    tm = min(tm, r8)
    if tm == r8 and r8 >= 16:
        tm = max(8, ((r8 // 2) // 8) * 8)
    return tm


def _pad_rows(x, rows):
    pad = rows - x.shape[0]
    if pad == 0:
        return x
    return jnp.pad(x, ((0, pad), (0, 0)))


# ---------------------------------------------------------------------------
# Kernel 1: tiled GEMM  (out = act(a @ w + b))
# ---------------------------------------------------------------------------
def _matmul_kernel(a_ref, w_ref, b_ref, o_ref, acc_ref, *, relu):
    @pl.when(pl.program_id(2) == 0)
    def _():
        acc_ref[...] = jnp.zeros_like(acc_ref)

    acc_ref[...] += jnp.dot(a_ref[...], w_ref[...],
                            preferred_element_type=jnp.float32)

    @pl.when(pl.program_id(2) == pl.num_programs(2) - 1)
    def _():
        out = acc_ref[...] + b_ref[...].astype(jnp.float32)
        if relu:
            out = jnp.maximum(out, 0.0)
        o_ref[...] = out.astype(o_ref.dtype)


def linear(x2, w, b=None, *, relu=False):
    """x2: (R, K) @ w: (K, N) (+ b) with optional ReLU epilogue."""
    R, K = x2.shape
    Kw, N = w.shape
    assert K == Kw
    dtype = x2.dtype
    itemsize = jnp.dtype(dtype).itemsize
    if b is None:
        b = jnp.zeros((N,), dtype)
    b2 = b.reshape(1, N).astype(dtype)

    tk = _axis_tile(K)
    tn = _axis_tile(N)
    # per-row VMEM: a + out tiles double-buffered + f32 accumulator
    per_row = 2 * tk * itemsize + 2 * tn * itemsize + 4 * tn
    fixed = 2 * tk * tn * itemsize + 2 * tn * itemsize        # w tile + bias
    tm = _row_tile(R, per_row, fixed)
    Rp = _round_up(R, tm)
    xp = _pad_rows(x2, Rp)

    grid = (Rp // tm, pl.cdiv(N, tn), pl.cdiv(K, tk))
    cost = pl.CostEstimate(
        flops=2 * Rp * N * K, transcendentals=0,
        bytes_accessed=(Rp * K + K * N + Rp * N + N) * itemsize)

    out = pl.pallas_call(
        functools.partial(_matmul_kernel, relu=relu),
        out_shape=jax.ShapeDtypeStruct((Rp, N), dtype),
        grid_spec=pltpu.PrefetchScalarGridSpec(
            num_scalar_prefetch=0,
            grid=grid,
            in_specs=[
                pl.BlockSpec((tm, tk), lambda i, j, k: (i, k)),
                pl.BlockSpec((tk, tn), lambda i, j, k: (k, j)),
                pl.BlockSpec((1, tn), lambda i, j, k: (0, j)),
            ],
            out_specs=pl.BlockSpec((tm, tn), lambda i, j, k: (i, j)),
            scratch_shapes=[pltpu.VMEM((tm, tn), jnp.float32)],
        ),
        compiler_params=_cparams(
            dimension_semantics=("parallel", "parallel", "arbitrary")),
        cost_estimate=cost,
    )(xp, w.astype(dtype), b2)
    return out[:R]


# ---------------------------------------------------------------------------
# Kernel 2: GEMM with AddNorm epilogue  (out = LayerNorm(a @ w + b + residual))
# ---------------------------------------------------------------------------
def _matmul_addnorm_kernel(a_ref, w_ref, b_ref, res_ref, g_ref, beta_ref,
                           o_ref, acc_ref):
    @pl.when(pl.program_id(1) == 0)
    def _():
        acc_ref[...] = jnp.zeros_like(acc_ref)

    acc_ref[...] += jnp.dot(a_ref[...], w_ref[...],
                            preferred_element_type=jnp.float32)

    @pl.when(pl.program_id(1) == pl.num_programs(1) - 1)
    def _():
        h = float(o_ref.shape[-1])
        # all operands upcast to f32 BEFORE the add (bf16-safe)
        z = (acc_ref[...] + b_ref[...].astype(jnp.float32)
             + res_ref[...].astype(jnp.float32))
        # one-pass LayerNorm statistics: both lane reductions come off the same z
        s1 = jnp.sum(z, axis=-1, keepdims=True)
        s2 = jnp.sum(z * z, axis=-1, keepdims=True)
        mean = s1 * (1.0 / h)
        var = s2 * (1.0 / h) - mean * mean
        inv = lax.rsqrt(var + LN_EPS)
        out = (z - mean) * inv * g_ref[...].astype(jnp.float32) \
              + beta_ref[...].astype(jnp.float32)
        o_ref[...] = out.astype(o_ref.dtype)


def linear_addnorm(x2, w, b, residual2, gamma, beta):
    """LayerNorm_H( x2 @ w + b + residual2 ).  x2:(R,K)  w:(K,H)  residual2:(R,H)."""
    R, K = x2.shape
    Kw, H = w.shape
    assert K == Kw and residual2.shape == (R, H)
    dtype = residual2.dtype
    itemsize = jnp.dtype(dtype).itemsize
    if b is None:
        b = jnp.zeros((H,), dtype)

    tk = _axis_tile(K)
    # LayerNorm reduces over the whole H axis -> keep the output lane axis
    # un-tiled (lane-dense last dim, single-tile row reduction).
    per_row = 2 * tk * itemsize + 2 * H * itemsize + 2 * H * itemsize + 4 * H
    fixed = 2 * tk * H * itemsize + 3 * 2 * H * itemsize
    tm = _row_tile(R, per_row, fixed)
    Rp = _round_up(R, tm)
    xp = _pad_rows(x2, Rp)
    rp = _pad_rows(residual2, Rp)

    grid = (Rp // tm, K // tk)
    cost = pl.CostEstimate(
        flops=2 * Rp * H * K + 10 * Rp * H, transcendentals=Rp,
        bytes_accessed=(Rp * K + K * H + 2 * Rp * H + 3 * H) * itemsize)

    out = pl.pallas_call(
        _matmul_addnorm_kernel,
        out_shape=jax.ShapeDtypeStruct((Rp, H), dtype),
        grid_spec=pltpu.PrefetchScalarGridSpec(
            num_scalar_prefetch=0,
            grid=grid,
            in_specs=[
                pl.BlockSpec((tm, tk), lambda i, k: (i, k)),
                pl.BlockSpec((tk, H), lambda i, k: (k, 0)),
                pl.BlockSpec((1, H), lambda i, k: (0, 0)),
                pl.BlockSpec((tm, H), lambda i, k: (i, 0)),
                pl.BlockSpec((1, H), lambda i, k: (0, 0)),
                pl.BlockSpec((1, H), lambda i, k: (0, 0)),
            ],
            out_specs=pl.BlockSpec((tm, H), lambda i, k: (i, 0)),
            scratch_shapes=[pltpu.VMEM((tm, H), jnp.float32)],
        ),
        compiler_params=_cparams(
            dimension_semantics=("parallel", "arbitrary")),
        cost_estimate=cost,
    )(xp, w.astype(dtype), b.reshape(1, H).astype(dtype), rp,
      gamma.reshape(1, H).astype(dtype), beta.reshape(1, H).astype(dtype))
    return out[:R]


# ---------------------------------------------------------------------------
# Kernel 3: scaled-dot-product attention with valid_lens masking
# ---------------------------------------------------------------------------
def _attention_kernel(vl_ref, q_ref, k_ref, v_ref, o_ref, *, num_heads, scale):
    b = pl.program_id(0) // num_heads          # batch index of this (b, head)
    q = q_ref[0].astype(jnp.float32)           # (S, dh)
    k = k_ref[0].astype(jnp.float32)
    v = v_ref[0].astype(jnp.float32)
    s = lax.dot_general(q, k, (((1,), (1,)), ((), ())),
                        preferred_element_type=jnp.float32) * scale   # (S, S)
    vl = vl_ref[b]
    col = lax.broadcasted_iota(jnp.int32, s.shape, 1)
    s = jnp.where(col < vl, s, -1e6)           # d2l masked_softmax fill value
    s = s - jnp.max(s, axis=-1, keepdims=True)
    p = jnp.exp(s)
    p = p / jnp.sum(p, axis=-1, keepdims=True)
    # TODO(synk): attention-weight dropout omitted (eval mode -> identity)
    o_ref[0] = jnp.dot(p, v, preferred_element_type=jnp.float32).astype(o_ref.dtype)


def multihead_attention_core(q, k, v, valid_lens, num_heads):
    """q, k, v: (B*num_heads, S, dh); valid_lens: (B,) int32."""
    BH, S, dh = q.shape
    scale = 1.0 / math.sqrt(dh)
    itemsize = jnp.dtype(q.dtype).itemsize
    cost = pl.CostEstimate(
        flops=4 * BH * S * S * dh, transcendentals=BH * S * S,
        bytes_accessed=4 * BH * S * dh * itemsize)
    return pl.pallas_call(
        functools.partial(_attention_kernel, num_heads=num_heads, scale=scale),
        out_shape=jax.ShapeDtypeStruct((BH, S, dh), q.dtype),
        grid_spec=pltpu.PrefetchScalarGridSpec(
            num_scalar_prefetch=1,           # valid_lens -> SMEM
            grid=(BH,),
            in_specs=[
                pl.BlockSpec((1, S, dh), lambda i, vl: (i, 0, 0)),
                pl.BlockSpec((1, S, dh), lambda i, vl: (i, 0, 0)),
                pl.BlockSpec((1, S, dh), lambda i, vl: (i, 0, 0)),
            ],
            out_specs=pl.BlockSpec((1, S, dh), lambda i, vl: (i, 0, 0)),
        ),
        compiler_params=_cparams(dimension_semantics=("parallel",)),
        cost_estimate=cost,
    )(valid_lens.astype(jnp.int32), q, k, v)


# ---------------------------------------------------------------------------
# EncoderBlock forward (eval mode)
# ---------------------------------------------------------------------------
def encoder_block_forward(params, X, valid_lens):
    B, S, H = X.shape
    nh = params["num_heads"]
    dh = H // nh
    R = B * S
    x2 = X.reshape(R, H)

    # Multi-head self-attention (W_q/W_k/W_v have no bias: use_bias=False)
    q2 = linear(x2, params["W_q"])
    k2 = linear(x2, params["W_k"])
    v2 = linear(x2, params["W_v"])

    def to_heads(t):   # (R, H) -> (B*nh, S, dh)   (d2l transpose_qkv)
        return t.reshape(B, S, nh, dh).transpose(0, 2, 1, 3).reshape(B * nh, S, dh)

    attn = multihead_attention_core(to_heads(q2), to_heads(k2), to_heads(v2),
                                    valid_lens, nh)
    attn2 = attn.reshape(B, nh, S, dh).transpose(0, 2, 1, 3).reshape(R, H)

    # out-projection fused with AddNorm1 (dropout == identity in eval)
    y2 = linear_addnorm(attn2, params["W_o"], None, x2,
                        params["ln1_gamma"], params["ln1_beta"])

    # position-wise FFN; dense2 fused with AddNorm2
    h2 = linear(y2, params["ffn_w1"], params["ffn_b1"], relu=True)
    out2 = linear_addnorm(h2, params["ffn_w2"], params["ffn_b2"], y2,
                          params["ln2_gamma"], params["ln2_beta"])
    return out2.reshape(B, S, H)


# ---------------------------------------------------------------------------
# Pure-JAX reference
# ---------------------------------------------------------------------------
def encoder_block_reference(params, X, valid_lens):
    B, S, H = X.shape
    nh = params["num_heads"]
    dh = H // nh
    x2 = X.reshape(B * S, H)
    hi = jax.lax.Precision.HIGHEST

    def lin(t, w, b=None):
        o = jnp.dot(t, w, precision=hi)
        return o if b is None else o + b

    def to_heads(t):
        return t.reshape(B, S, nh, dh).transpose(0, 2, 1, 3).reshape(B * nh, S, dh)

    q = to_heads(lin(x2, params["W_q"]))
    k = to_heads(lin(x2, params["W_k"]))
    v = to_heads(lin(x2, params["W_v"]))
    scores = jnp.einsum("bqd,bkd->bqk", q, k, precision=hi) / math.sqrt(dh)
    vl = jnp.repeat(valid_lens, nh)
    mask = jnp.arange(S)[None, None, :] < vl[:, None, None]
    p = jax.nn.softmax(jnp.where(mask, scores, -1e6), axis=-1)
    attn = jnp.einsum("bqk,bkd->bqd", p, v, precision=hi)
    attn2 = attn.reshape(B, nh, S, dh).transpose(0, 2, 1, 3).reshape(B * S, H)

    def layer_norm(z, g, b):
        z = z.astype(jnp.float32)
        mean = z.mean(-1, keepdims=True)
        var = ((z - mean) ** 2).mean(-1, keepdims=True)
        return (z - mean) / jnp.sqrt(var + LN_EPS) * g + b

    y2 = layer_norm(lin(attn2, params["W_o"]) + x2,
                    params["ln1_gamma"], params["ln1_beta"])
    h2 = jax.nn.relu(lin(y2, params["ffn_w1"], params["ffn_b1"]))
    out2 = layer_norm(lin(h2, params["ffn_w2"], params["ffn_b2"]) + y2,
                      params["ln2_gamma"], params["ln2_beta"])
    return out2.reshape(B, S, H)


if __name__ == "__main__":
    B, S, H = 2, 8, 32          # batch, seq, num_hiddens (= norm_shape)
    num_heads, ffn_hidden = 4, 64
    key = jax.random.PRNGKey(0)
    ks = jax.random.split(key, 8)
    sc = 0.1
    params = {
        "num_heads": num_heads,
        "W_q": sc * jax.random.normal(ks[0], (H, H), jnp.float32),
        "W_k": sc * jax.random.normal(ks[1], (H, H), jnp.float32),
        "W_v": sc * jax.random.normal(ks[2], (H, H), jnp.float32),
        "W_o": sc * jax.random.normal(ks[3], (H, H), jnp.float32),
        "ln1_gamma": jnp.ones((H,), jnp.float32),
        "ln1_beta": jnp.zeros((H,), jnp.float32),
        "ffn_w1": sc * jax.random.normal(ks[4], (H, ffn_hidden), jnp.float32),
        "ffn_b1": jnp.zeros((ffn_hidden,), jnp.float32),
        "ffn_w2": sc * jax.random.normal(ks[5], (ffn_hidden, H), jnp.float32),
        "ffn_b2": jnp.zeros((H,), jnp.float32),
        "ln2_gamma": jnp.ones((H,), jnp.float32),
        "ln2_beta": jnp.zeros((H,), jnp.float32),
    }
    X = jax.random.normal(ks[6], (B, S, H), jnp.float32)
    valid_lens = jnp.array([5, 8], dtype=jnp.int32)

    out = encoder_block_forward(params, X, valid_lens)
    out = jax.block_until_ready(out)
    ref = encoder_block_reference(params, X, valid_lens)

    assert out.shape == (B, S, H)
    max_err = float(jnp.max(jnp.abs(out - ref)))
    assert jnp.allclose(out, ref, atol=5e-4, rtol=5e-4), max_err
    print("KERNEL_OK")
</pallas_src>

<mosaic_0001>
module attributes {stable_mosaic.version = 11 : i64} {
  func.func @_matmul_kernel(%arg0: i32, %arg1: i32, %arg2: i32, %arg3: memref<8x32xf32, #tpu.memory_space<vmem>>, %arg4: memref<32x32xf32, #tpu.memory_space<vmem>>, %arg5: memref<1x32xf32, #tpu.memory_space<vmem>>, %arg6: memref<8x32xf32, #tpu.memory_space<vmem>>, %arg7: memref<8x32xf32, #tpu.memory_space<vmem>>) attributes {dimension_semantics = [#tpu.dimension_semantics<parallel>, #tpu.dimension_semantics<parallel>, #tpu.dimension_semantics<arbitrary>], iteration_bounds = array<i64: 2, 1, 1>, scalar_prefetch = 0 : i64, scratch_operands = 1 : i64, tpu.core_type = #tpu.core_type<tc>, window_params = [{transform_indices = @transform_0, window_bounds = array<i64: 8, 32>}, {transform_indices = @transform_1, window_bounds = array<i64: 32, 32>}, {transform_indices = @transform_2, window_bounds = array<i64: 1, 32>}, {transform_indices = @transform_3, window_bounds = array<i64: 8, 32>}]} {
    %c0_i32 = arith.constant 0 : i32
    %0 = arith.cmpi eq, %arg2, %c0_i32 : i32
    %1 = arith.extui %0 : i1 to i32
    %c0_i32_0 = arith.constant 0 : i32
    %2 = arith.cmpi ne, %1, %c0_i32_0 : i32
    scf.if %2 {
      %cst_10 = arith.constant 0.000000e+00 : f32
      %12 = vector.broadcast %cst_10 : f32 to vector<8x32xf32>
      %c0_11 = arith.constant 0 : index
      %c0_12 = arith.constant 0 : index
      %13 = vector.load %arg7[%c0_11, %c0_12] : memref<8x32xf32, #tpu.memory_space<vmem>>, vector<8x32xf32>
      tpu.vector_store %arg7[%c0_11, %c0_12], %12 {strides = array<i32>} : memref<8x32xf32, #tpu.memory_space<vmem>>, vector<8x32xf32>,
    } else {
    }
    %c0 = arith.constant 0 : index
    %c0_1 = arith.constant 0 : index
    %3 = vector.load %arg7[%c0, %c0_1] : memref<8x32xf32, #tpu.memory_space<vmem>>, vector<8x32xf32>
    %c0_2 = arith.constant 0 : index
    %c0_3 = arith.constant 0 : index
    %4 = vector.load %arg3[%c0_2, %c0_3] : memref<8x32xf32, #tpu.memory_space<vmem>>, vector<8x32xf32>
    %c0_4 = arith.constant 0 : index
    %c0_5 = arith.constant 0 : index
    %5 = vector.load %arg4[%c0_4, %c0_5] : memref<32x32xf32, #tpu.memory_space<vmem>>, vector<32x32xf32>
    %cst = arith.constant dense<0.000000e+00> : vector<8x32xf32>
    %6 = tpu.matmul %4, %5, %cst {dimension_numbers = #tpu.dot_dimension_numbers<[1], [0], [0], [1], [0, 0, 1, 1], [], []>} : vector<8x32xf32>, vector<32x32xf32>, vector<8x32xf32> -> vector<8x32xf32>
    %7 = arith.addf %3, %6 : vector<8x32xf32>
    %c0_6 = arith.constant 0 : index
    %c0_7 = arith.constant 0 : index
    %8 = vector.load %arg7[%c0_6, %c0_7] : memref<8x32xf32, #tpu.memory_space<vmem>>, vector<8x32xf32>
    tpu.vector_store %arg7[%c0_6, %c0_7], %7 {strides = array<i32>} : memref<8x32xf32, #tpu.memory_space<vmem>>, vector<8x32xf32>,
    %c0_i32_8 = arith.constant 0 : i32
    %9 = arith.cmpi eq, %arg2, %c0_i32_8 : i32
    %10 = arith.extui %9 : i1 to i32
    %c0_i32_9 = arith.constant 0 : i32
    %11 = arith.cmpi ne, %10, %c0_i32_9 : i32
    scf.if %11 {
      %c0_10 = arith.constant 0 : index
      %c0_11 = arith.constant 0 : index
      %12 = vector.load %arg7[%c0_10, %c0_11] : memref<8x32xf32, #tpu.memory_space<vmem>>, vector<8x32xf32>
      %c0_12 = arith.constant 0 : index
      %c0_13 = arith.constant 0 : index
      %13 = vector.load %arg5[%c0_12, %c0_13] : memref<1x32xf32, #tpu.memory_space<vmem>>, vector<1x32xf32>
      %14 = vector.broadcast %13 : vector<1x32xf32> to vector<8x32xf32>
      %15 = arith.addf %12, %14 : vector<8x32xf32>
      %c0_14 = arith.constant 0 : index
      %c0_15 = arith.constant 0 : index
      %16 = vector.load %arg6[%c0_14, %c0_15] : memref<8x32xf32, #tpu.memory_space<vmem>>, vector<8x32xf32>
      tpu.vector_store %arg6[%c0_14, %c0_15], %15 {strides = array<i32>} : memref<8x32xf32, #tpu.memory_space<vmem>>, vector<8x32xf32>,
    } else {
    }
    return
  }
  func.func @transform_0(%arg0: i32, %arg1: i32, %arg2: i32) -> (i32, i32) {
    %c0_i32 = arith.constant 0 : i32
    return %arg0, %arg2 : i32, i32
  }
  func.func @transform_1(%arg0: i32, %arg1: i32, %arg2: i32) -> (i32, i32) {
    %c0_i32 = arith.constant 0 : i32
    return %arg2, %arg1 : i32, i32
  }
  func.func @transform_2(%arg0: i32, %arg1: i32, %arg2: i32) -> (i32, i32) {
    %c0_i32 = arith.constant 0 : i32
    %c0_i32_0 = arith.constant 0 : i32
    return %c0_i32, %arg1 : i32, i32
  }
  func.func @transform_3(%arg0: i32, %arg1: i32, %arg2: i32) -> (i32, i32) {
    %c0_i32 = arith.constant 0 : i32
    return %arg0, %arg1 : i32, i32
  }
}

</mosaic_0001>

<llo_original>
// kernel: tpu_custom_call.1
$region0: #{tpu_custom_call.1}
  #allocation0 [shape = 'u32[]', space=smem, size = 0x4, offset = 0x4, fixed_abs, tag = 'smem constant byte address 0x4 - core index']
  #allocation1 [shape = 'u32[72,128]{1,0:T(1,128)}', space=vmem, size = 0x9000, scoped, tag = 'internal scratch']
  #allocation2 [shape = 'f32[8,32]{1,0:T(8,128)}', space=vmem, size = 0x1000, scoped, tag = 'scratch operand']
  %s0 = inlined_call_operand.hbm [shape: f32[16,32], index: 0, kind: input, shape index: {}]
  %s1 = inlined_call_operand.hbm [shape: f32[32,32], index: 1, kind: input, shape index: {}]
  %s2 = inlined_call_operand.vmem [shape: f32[1,32], index: 2, kind: input, shape index: {}]
  %s3 = inlined_call_operand.hbm [shape: f32[16,32], index: 3, kind: output, shape index: {}]
  %s4 = sld [smem:[#allocation0]]
  $region61: #{tpu_custom_call.1} parent=0
    _
  %s6 = ssub.s32 1, %s4
  %s7 = scalar_select 0, %s6, %s4
  $region1: #{tpu_custom_call.1} parent=0
    #allocation3 [shape = 'u8[8192]{0}', space=vmem, size = 0x2000, scoped, tag = 'input window, operand 0']
    #allocation4 [shape = 's32[2]{0}', space=sflag, size = 0x8, scoped, tag = 'scoped memory for tpu_custom_call.1']
    #allocation5 [shape = 's32[2]{0}', space=sflag, size = 0x8, scoped, tag = 'scoped memory for tpu_custom_call.1']
    #allocation6 [shape = 'u8[16384]{0}', space=vmem, size = 0x4000, scoped, tag = 'input window, operand 1, single buffered']
    #allocation7 [shape = 's32[1]{0}', space=sflag, size = 0x4, scoped, tag = 'scoped memory for tpu_custom_call.1']
    #allocation8 [shape = 'u8[8192]{0}', space=vmem, size = 0x2000, scoped, tag = 'output window, operand 0']
    %8 = vsyncpa [#allocation4], 0
    %s9 = scalar_lea.sflag [#allocation4], 1
    %10 = vsyncpa %s9, 0
    %11 = vsyncpa [#allocation7], 0
    %12 = vsyncpa [#allocation5], 0
    %s13 = scalar_lea.sflag [#allocation5], 1
    %14 = vsyncpa %s13, 0
    loop: start=0, step=1, limit=4
    $region2: #{tpu_custom_call.1} parent=1 // loop_pre_header
      _
    $region3: #{tpu_custom_call.1} parent=1 // loop_header
      %s16 = sphi 0, %s20
      %p17 = scmp.ge.s32.totalorder %s16, 4
      %s23 = sphi 0, %s42
      %s24 = sphi 0, %s38
      %s25 = sphi 0, %s34
      %s26 = sphi 0, %s23
      %s27 = sphi 0, %s24
      %s28 = sphi 0, %s25
      %s29 = sphi 0, %s26
      %s30 = sphi 0, %s27
      %s31 = sphi 0, %s28
      %s47 = sphi 0, %s49
      %s50 = sphi 0, %s47
      %s51 = sphi 0, %s50
      %s67 = sphi 0, %s51
      %s75 = sphi 0, %s77
      %s78 = sphi 0, %s75
      %s79 = sphi 0, %s78
      %s95 = sphi 0, %s79
      %s101 = sphi 0, %s103
      %s104 = sphi 0, %s101
      %s105 = sphi 0, %s104
      %s121 = sphi 0, %s105
      %s129 = sphi 0, %s131
      %s132 = sphi 0, %s129
      %s133 = sphi 0, %s132
      %s149 = sphi 0, %s133
    $region4: #{tpu_custom_call.1} parent=1 // loop_header_branch
      %19 = sbr.rel (%p17) target = $region8
    $region5: #{tpu_custom_call.1} parent=1 // loop_body
      %s21 = ssub.s32 %s16, 1
      %s22 = ssub.s32 %s16, 2
      %s32 = sadd.s32 1, %s25
      %p33 = scmp.ge.s32.totalorder %s32, 1
      %s34 = scalar_select %p33, 0, %s32
      %s35 = sadd.s32 1, %s24
      %s36 = scalar_select %p33, %s35, %s24
      %p37 = scmp.ge.s32.totalorder %s36, 1
      %s38 = scalar_select %p37, 0, %s36
      %s39 = sadd.s32 1, %s23
      %s40 = scalar_select %p37, %s39, %s23
      %p41 = scmp.ge.s32.totalorder %s40, 2
      %s42 = scalar_select %p41, 0, %s40
      %s43 = ssub.s32 %s23, %s42
      %s44 = ssub.s32 %s25, %s34
      %s45 = sor.u32 %s43, %s44
      %p46 = scmp.eq.s32.totalorder %s45, 0
      %s48 = sadd.s32 %s47, 1
      %s49 = scalar_select %p46, %s47, %s48
      %p52 = pneg %p46
      %p53 = scmp.eq.s32.totalorder %s16, 1
      %p54 = por %p52, %p53
      %p55 = scmp.ne.s32.totalorder %s47, %s50
      %p56 = scmp.eq.s32.totalorder %s16, 0
      %p57 = por %p55, %p56
      %p58 = scmp.ne.s32.totalorder %s47, %s50
      %p59 = scmp.eq.s32.totalorder %s21, 1
      %p60 = por %p58, %p59
      %p61 = scmp.ne.s32.totalorder %s50, %s51
      %p62 = scmp.eq.s32.totalorder %s21, 0
      %p63 = por %p61, %p62
      %p64 = scmp.ne.s32.totalorder %s50, %s51
      %p65 = scmp.eq.s32.totalorder %s22, 1
      %p66 = por %p64, %p65
      %p68 = scmp.ne.s32.totalorder %s51, %s67
      %p69 = scmp.eq.s32.totalorder %s22, 0
      %p70 = por %p68, %p69
      %s71 = ssub.s32 %s25, %s34
      %s72 = ssub.s32 %s24, %s38
      %s73 = sor.u32 %s71, %s72
      %p74 = scmp.eq.s32.totalorder %s73, 0
      %s76 = sadd.s32 %s75, 1
      %s77 = scalar_select %p74, %s75, %s76
      %p80 = pneg %p74
      %p81 = scmp.eq.s32.totalorder %s16, 1
      %p82 = por %p80, %p81
      %p83 = scmp.ne.s32.totalorder %s75, %s78
      %p84 = scmp.eq.s32.totalorder %s16, 0
      %p85 = por %p83, %p84
      %p86 = scmp.ne.s32.totalorder %s75, %s78
      %p87 = scmp.eq.s32.totalorder %s21, 1
      %p88 = por %p86, %p87
      %p89 = scmp.ne.s32.totalorder %s78, %s79
      %p90 = scmp.eq.s32.totalorder %s21, 0
      %p91 = por %p89, %p90
      %p92 = scmp.ne.s32.totalorder %s78, %s79
      %p93 = scmp.eq.s32.totalorder %s22, 1
      %p94 = por %p92, %p93
      %p96 = scmp.ne.s32.totalorder %s79, %s95
      %p97 = scmp.eq.s32.totalorder %s22, 0
      %p98 = por %p96, %p97
      %s99 = ssub.s32 %s24, %s38
      %p100 = scmp.eq.s32.totalorder %s99, 0
      %s102 = sadd.s32 %s101, 1
      %s103 = scalar_select %p100, %s101, %s102
      %p106 = pneg %p100
      %p107 = scmp.eq.s32.totalorder %s16, 1
      %p108 = por %p106, %p107
      %p109 = scmp.ne.s32.totalorder %s101, %s104
      %p110 = scmp.eq.s32.totalorder %s16, 0
      %p111 = por %p109, %p110
      %p112 = scmp.ne.s32.totalorder %s101, %s104
      %p113 = scmp.eq.s32.totalorder %s21, 1
      %p114 = por %p112, %p113
      %p115 = scmp.ne.s32.totalorder %s104, %s105
      %p116 = scmp.eq.s32.totalorder %s21, 0
      %p117 = por %p115, %p116
      %p118 = scmp.ne.s32.totalorder %s104, %s105
      %p119 = scmp.eq.s32.totalorder %s22, 1
      %p120 = por %p118, %p119
      %p122 = scmp.ne.s32.totalorder %s105, %s121
      %p123 = scmp.eq.s32.totalorder %s22, 0
      %p124 = por %p122, %p123
      %s125 = ssub.s32 %s23, %s42
      %s126 = ssub.s32 %s24, %s38
      %s127 = sor.u32 %s125, %s126
      %p128 = scmp.eq.s32.totalorder %s127, 0
      %s130 = sadd.s32 %s129, 1
      %s131 = scalar_select %p128, %s129, %s130
      %p134 = pneg %p128
      %p135 = scmp.eq.s32.totalorder %s16, 1
      %p136 = por %p134, %p135
      %p137 = scmp.ne.s32.totalorder %s129, %s132
      %p138 = scmp.eq.s32.totalorder %s16, 0
      %p139 = por %p137, %p138
      %p140 = scmp.ne.s32.totalorder %s129, %s132
      %p141 = scmp.eq.s32.totalorder %s21, 1
      %p142 = por %p140, %p141
      %p143 = scmp.ne.s32.totalorder %s132, %s133
      %p144 = scmp.eq.s32.totalorder %s21, 0
      %p145 = por %p143, %p144
      %p146 = scmp.ne.s32.totalorder %s132, %s133
      %p147 = scmp.eq.s32.totalorder %s22, 1
      %p148 = por %p146, %p147
      %p150 = scmp.ne.s32.totalorder %s133, %s149
      %p151 = scmp.eq.s32.totalorder %s22, 0
      %p152 = por %p150, %p151
      %p153 = scmp.le.s32.totalorder 1, %s16
      %p154 = scmp.lt.s32.totalorder %s16, 3
      %p155 = pnand %p153, %p154
      %p156 = pneg %p155
      // Predicated region
      $region9: #{tpu_custom_call.1} parent=5 // pred_check
        _
      $region10: #{tpu_custom_call.1} parent=5 // pred_check_branch
        %158 = sbr.rel (%p155) target = $region12
      $region11: #{tpu_custom_call.1} parent=5 // pred_region
        %s159 = ssub.s32 %s16, 1
        // Predicated region
        $region13: #{tpu_custom_call.1} parent=11 // pred_check
          %p160 = pneg %p91
        $region14: #{tpu_custom_call.1} parent=11 // pred_check_branch
          %162 = sbr.rel (%p160) target = $region16
        $region15: #{tpu_custom_call.1} parent=11 // pred_region
          %s163 = smul.u32 4, %s28
          %165 = vsyncadd [#allocation7], 0
          %s166 = sadd.s32 %s27, %s163
          %s167 = smul.addr %s166, 8
          %s168 = scalar_lea.hbm %s1, %s167
          %s169 = sshll.u32 %s168, 4
          %s170 = int_to_ptr.hbm [resolvable:$true] %s169
          %s171 = sshll.u32 [#allocation6], 4
          %s172 = int_to_ptr.vmem [resolvable:$true] %s171
          %177 = dma.hbm_to_vmem [thread:$0]  %s170, 512, %s172, [#allocation7], 128, 128, 8
        $region16: #{tpu_custom_call.1} parent=11 // pred_fallthru
          _
        // Predicated region
        $region17: #{tpu_custom_call.1} parent=11 // pred_check
          %p178 = pneg %p117
        $region18: #{tpu_custom_call.1} parent=11 // pred_check_branch
          %180 = sbr.rel (%p178) target = $region20
        $region19: #{tpu_custom_call.1} parent=11 // pred_region
          %p181 = scmp.lt.s32.totalorder %s27, 0
          %s182 = scalar_select %p181, %s27, 0
          %s183 = scalar_lea.vmem %s2, %s182
        $region20: #{tpu_custom_call.1} parent=11 // pred_fallthru
          _
      $region12: #{tpu_custom_call.1} parent=5 // pred_fallthru
        _
      %p184 = scmp.lt.s32.totalorder %s16, 2
      // Predicated region
      $region21: #{tpu_custom_call.1} parent=5 // pred_check
        %p185 = pneg %p184
      $region22: #{tpu_custom_call.1} parent=5 // pred_check_branch
        %187 = sbr.rel (%p185) target = $region24
      $region23: #{tpu_custom_call.1} parent=5 // pred_region
        // Predicated region
        $region25: #{tpu_custom_call.1} parent=23 // pred_check
          %p188 = pneg %p57
        $region26: #{tpu_custom_call.1} parent=23 // pred_check_branch
          %190 = sbr.rel (%p188) target = $region28
        $region27: #{tpu_custom_call.1} parent=23 // pred_region
          %s191 = sand.u32 %s47, 1
          %s192 = scalar_lea.sflag [#allocation4], %s191
          %s193 = sand.u32 %s47, 1
          %s194 = smul.addr %s193, 8
          %s195 = scalar_lea.vmem [#allocation3], %s194
          %197 = vsyncadd %s192, 0
          %s198 = sadd.s32 %s25, %s23
          %s199 = smul.addr %s198, 8
          %s200 = scalar_lea.hbm %s0, %s199
          %s202 = sshll.u32 %s200, 4
          %s203 = int_to_ptr.hbm [resolvable:$true] %s202
          %s204 = sshll.u32 %s195, 4
          %s205 = int_to_ptr.vmem [resolvable:$true] %s204
          %207 = dma.hbm_to_vmem [thread:$0]  %s203, 128, %s205, %s192
        $region28: #{tpu_custom_call.1} parent=23 // pred_fallthru
          _
      $region24: #{tpu_custom_call.1} parent=5 // pred_fallthru
        _
      %p208 = scmp.le.s32.totalorder 1, %s16
      %p209 = scmp.lt.s32.totalorder %s16, 3
      %p210 = pnand %p208, %p209
      %p211 = pneg %p210
      // Predicated region
      $region29: #{tpu_custom_call.1} parent=5 // pred_check
        _
      $region30: #{tpu_custom_call.1} parent=5 // pred_check_branch
        %213 = sbr.rel (%p210) target = $region32
      $region31: #{tpu_custom_call.1} parent=5 // pred_region
        %s214 = ssub.s32 %s16, 1
        %s215 = sand.u32 %s50, 1
        %s216 = scalar_lea.sflag [#allocation4], %s215
        %s217 = sand.u32 %s50, 1
        %s218 = smul.addr %s217, 8
        %s219 = scalar_lea.vmem [#allocation3], %s218
        // Predicated region
        $region33: #{tpu_custom_call.1} parent=31 // pred_check
          %p220 = pneg %p63
        $region34: #{tpu_custom_call.1} parent=31 // pred_check_branch
          %222 = sbr.rel (%p220) target = $region36
        $region35: #{tpu_custom_call.1} parent=31 // pred_region
          %224 = dma.done %s216, 128
        $region36: #{tpu_custom_call.1} parent=31 // pred_fallthru
          _
        // Predicated region
        $region37: #{tpu_custom_call.1} parent=31 // pred_check
          %p225 = pneg %p91
        $region38: #{tpu_custom_call.1} parent=31 // pred_check_branch
          %227 = sbr.rel (%p225) target = $region40
        $region39: #{tpu_custom_call.1} parent=31 // pred_region
          %229 = dma.done [#allocation7], 512
        $region40: #{tpu_custom_call.1} parent=31 // pred_fallthru
          _
        %s230 = sand.u32 %s50, 1
        %s231 = scalar_lea.sflag [#allocation4], %s230
        %s232 = sand.u32 %s50, 1
        %s233 = smul.addr %s232, 8
        %s234 = scalar_lea.vmem [#allocation3], %s233
        %p235 = pneg %p63
        %p236 = pneg %p60
        %p237 = pneg %p91
        %p238 = pneg %p88
        %p239 = scmp.lt.s32.totalorder %s27, 0
        %s240 = scalar_select %p239, %s27, 0
        %s241 = scalar_lea.vmem %s2, %s240
        %p242 = pneg %p117
        %p243 = pneg %p114
        %p244 = pneg %p145
        %p245 = pneg %p142
        %s246 = sand.u32 %s132, 1
        %s247 = scalar_lea.sflag [#allocation5], %s246
        %s248 = sand.u32 %s132, 1
        %s249 = smul.addr %s248, 8
        %s250 = scalar_lea.vmem [#allocation8], %s249
        %s251 = smul.u32 4, %s28
        %p252 = scmp.lt.s32.totalorder %s27, 0
        %s253 = scalar_select %p252, %s27, 0
        %s254 = scalar_lea.vmem %s2, %s253
        %p255 = scmp.eq.s32.totalorder %s28, 0
        // Predicated region
        $region41: #{tpu_custom_call.1} parent=31 // pred_check
          %p256 = pneg %p255
        $region42: #{tpu_custom_call.1} parent=31 // pred_check_branch
          %258 = sbr.rel (%p256) target = $region44
        $region43: #{tpu_custom_call.1} parent=31 // pred_region
          %vm259 = vcmask 261120
          %260 = vst.msk [vmem:[#allocation2] sm:$0xff] %vm259, 0.0
        $region44: #{tpu_custom_call.1} parent=31 // pred_fallthru
          _
        %v261 = vld [vmem:[#allocation2] sm:$0xff]
        %v262 = vld [vmem:[%s219] sm:$0xff]
        %v263 = vld [vmem:[#allocation6] sm:$0xff]
        %v264 = vld [vmem:[#allocation6 + $0x8] sm:$0xff]
        %v265 = vld [vmem:[#allocation6 + $0x10] sm:$0xff]
        %v266 = vld [vmem:[#allocation6 + $0x18] sm:$0xff]
        %vm267 = vcmask 261120
        %v269 = vsel %vm267, %v262, 0
        %271 = vmatpush.msra.mxu0 0.0
        %272 = vmatpush.msra.mxu0 0.0
        %273 = vmatpush.msra.mxu0 0.0
        %274 = vmatpush.msra.mxu0 0.0
        %275 = vmatpush.msra.mxu0 0.0
        %276 = vmatpush.msra.mxu0 0.0
        %277 = vmatpush.msra.mxu0 0.0
        %278 = vmatpush.msra.mxu0 0.0
        %279 = vmatpush.msra.mxu0 0.0
        %280 = vmatpush.msra.mxu0 0.0
        %281 = vmatpush.msra.mxu0 0.0
        %282 = vmatpush.msra.mxu0 0.0
        %283 = vmatpush.msra.mxu0 %v266
        %284 = vmatpush.msra.mxu0 %v265
        %285 = vmatpush.msra.mxu0 %v264
        %286 = vmatpush.msra.mxu0 %v263
        %287 = vmatmul.f32.gmra.mxu0 %v269
        %v288 = vpop.f32.mrf.mxu0
        %v289 = vadd.f32 0.0, %v288
        %290 = vdwg.mxu0
        %v291 = vadd.f32 %v261, %v289
        %292 = vst.msk [vmem:[#allocation2] sm:$0xff] %vm267, %v291
        // Predicated region
        $region45: #{tpu_custom_call.1} parent=31 // pred_check
          %p293 = pneg %p255
        $region46: #{tpu_custom_call.1} parent=31 // pred_check_branch
          %295 = sbr.rel (%p293) target = $region48
        $region47: #{tpu_custom_call.1} parent=31 // pred_region
          %v296 = vld [vmem:[#allocation2] sm:$0xff]
          %v297 = vld [vmem:[%s254] sm:$0x1]
          %v299 = vperm.slane %v297, 0
          %v301 = vadd.f32 %v296, %v299
          %302 = vst.msk [vmem:[%s250] sm:$0xff] %vm267, %v301
        $region48: #{tpu_custom_call.1} parent=31 // pred_fallthru
          _
        %s303 = sand.u32 %s132, 1
        %s304 = scalar_lea.sflag [#allocation5], %s303
        %s305 = sand.u32 %s132, 1
        %s306 = smul.addr %s305, 8
        %s307 = scalar_lea.vmem [#allocation8], %s306
        // Predicated region
        $region49: #{tpu_custom_call.1} parent=31 // pred_check
          %p308 = pneg %p142
        $region50: #{tpu_custom_call.1} parent=31 // pred_check_branch
          %310 = sbr.rel (%p308) target = $region52
        $region51: #{tpu_custom_call.1} parent=31 // pred_region
          %312 = vsyncadd %s304, 0
          %s313 = sadd.s32 %s27, %s26
          %s314 = smul.addr %s313, 8
          %s315 = scalar_lea.hbm %s3, %s314
          %s317 = sshll.u32 %s307, 4
          %s318 = int_to_ptr.vmem [resolvable:$true] %s317
          %s319 = sshll.u32 %s315, 4
          %s320 = int_to_ptr.hbm [resolvable:$true] %s319
          %322 = dma.vmem_to_hbm [thread:$0]  %s318, 128, %s320, %s304
        $region52: #{tpu_custom_call.1} parent=31 // pred_fallthru
          _
      $region32: #{tpu_custom_call.1} parent=5 // pred_fallthru
        _
      %p323 = scmp.le.s32.totalorder 2, %s16
      // Predicated region
      $region53: #{tpu_custom_call.1} parent=5 // pred_check
        %p324 = pneg %p323
      $region54: #{tpu_custom_call.1} parent=5 // pred_check_branch
        %326 = sbr.rel (%p324) target = $region56
      $region55: #{tpu_custom_call.1} parent=5 // pred_region
        %s327 = ssub.s32 %s16, 2
        // Predicated region
        $region57: #{tpu_custom_call.1} parent=55 // pred_check
          %p328 = pneg %p148
        $region58: #{tpu_custom_call.1} parent=55 // pred_check_branch
          %330 = sbr.rel (%p328) target = $region60
        $region59: #{tpu_custom_call.1} parent=55 // pred_region
          %s331 = sand.u32 %s133, 1
          %s332 = scalar_lea.sflag [#allocation5], %s331
          %s333 = sand.u32 %s133, 1
          %s334 = smul.addr %s333, 8
          %s335 = scalar_lea.vmem [#allocation8], %s334
          %337 = dma.done %s332, 128
        $region60: #{tpu_custom_call.1} parent=55 // pred_fallthru
          _
      $region56: #{tpu_custom_call.1} parent=5 // pred_fallthru
        _
    $region6: #{tpu_custom_call.1} parent=1 // loop_footer
      %s20 = sadd.s32 1, %s16
    $region7: #{tpu_custom_call.1} parent=1 // loop_footer_branch
      %15 = sbr.rel target = $region3
    $region8: #{tpu_custom_call.1} parent=1 // loop_exit
      _
    %338 = vsyncpa [#allocation4], 1
    %s339 = scalar_lea.sflag [#allocation4], 1
    %340 = vsyncpa %s339, 1
    %341 = vsyncpa [#allocation7], 1
    %342 = vsyncpa [#allocation5], 1
    %s343 = scalar_lea.sflag [#allocation5], 1
    %344 = vsyncpa %s343, 1

</llo_original>
